<compile_context>
chip_gen: v7x
topology: tpu7x:2x2x1
jax: 0.10.0
libtpu: 0.0.40
codegen_flags: <defaults>
</compile_context>

<pallas_src>
import functools

import jax
import jax.numpy as jnp
from jax import lax
from jax.experimental import pallas as pl
from jax.experimental.pallas import tpu as pltpu

EPS = 1e-5  # PyTorch GroupNorm default


def _round_up(x, m):
    return ((x + m - 1) // m) * m


# ----------------------------- tiled matmul ---------------------------------

def _matmul_kernel(x_ref, w_ref, b_ref, o_ref, acc_ref):
    @pl.when(pl.program_id(2) == 0)
    def _init():
        acc_ref[...] = jnp.zeros_like(acc_ref)

    acc_ref[...] += jnp.dot(x_ref[...], w_ref[...],
                            preferred_element_type=jnp.float32)

    @pl.when(pl.program_id(2) == pl.num_programs(2) - 1)
    def _fin():
        o_ref[...] = (acc_ref[...] + b_ref[...]).astype(o_ref.dtype)


def prep_matmul(w, b, out_dtype=jnp.bfloat16):
    """Pre-cast/pre-pad a (K, N) weight and (N,) bias once at init time."""
    K, N = w.shape
    Np = _round_up(N, 128)                       # lane-dense output columns
    if Np <= 512:
        tn = Np                                  # single N tile for small N
    else:
        tn = next(t for t in (512, 256, 128) if Np % t == 0)
    tk = 512 if K > 512 else _round_up(K, 8)
    Kp = _round_up(K, tk)
    wp = jnp.pad(w.astype(jnp.bfloat16), ((0, Kp - K), (0, Np - N)))
    bp = jnp.pad(b.astype(jnp.float32), (0, Np - N)).reshape(1, Np)
    return dict(w=wp, b=bp, K=K, N=N, Kp=Kp, Np=Np, tk=tk, tn=tn,
                out_dtype=out_dtype)


def pallas_matmul(x, p):
    """x:(M,K) @ pre-padded weights -> (M,N); bf16 MXU operands, f32 accum."""
    M, K = x.shape
    assert K == p['K']
    tm = 512 if M >= 512 else _round_up(M, 8)
    Mp = _round_up(M, tm)
    xb = jnp.pad(x.astype(jnp.bfloat16), ((0, Mp - M), (0, p['Kp'] - K)))
    out = pl.pallas_call(
        _matmul_kernel,
        grid=(Mp // tm, p['Np'] // p['tn'], p['Kp'] // p['tk']),
        in_specs=[pl.BlockSpec((tm, p['tk']), lambda i, j, k: (i, k)),
                  pl.BlockSpec((p['tk'], p['tn']), lambda i, j, k: (k, j)),
                  pl.BlockSpec((1, p['tn']), lambda i, j, k: (0, j))],
        out_specs=pl.BlockSpec((tm, p['tn']), lambda i, j, k: (i, j)),
        out_shape=jax.ShapeDtypeStruct((Mp, p['Np']), p['out_dtype']),
        scratch_shapes=[pltpu.VMEM((tm, p['tn']), jnp.float32)],
        compiler_params=pltpu.CompilerParams(
            dimension_semantics=("parallel", "parallel", "arbitrary")),
    )(xb, p['w'], p['b'])
    return out[:M, :p['N']]


# ------------------------- in-kernel GroupNorm helper -------------------------

def _group_norm(x, mask, gamma, beta, inv_n, eps):
    """x: (N, C) f32; mask: (C, G) exact 0/1 group membership."""
    s = jnp.sum(x, axis=0, keepdims=True)                                   # (1, C)
    mean_g = jnp.dot(s, mask, preferred_element_type=jnp.float32) * inv_n   # (1, G)
    mean_c = lax.dot_general(mean_g, mask, (((1,), (1,)), ((), ())),
                             preferred_element_type=jnp.float32)            # (1, C)
    d = x - mean_c
    ssd = jnp.sum(d * d, axis=0, keepdims=True)                             # (1, C)
    var_g = jnp.dot(ssd, mask, preferred_element_type=jnp.float32) * inv_n  # (1, G)
    inv_g = lax.rsqrt(var_g + eps)
    inv_c = lax.dot_general(inv_g, mask, (((1,), (1,)), ((), ())),
                            preferred_element_type=jnp.float32)             # (1, C)
    return d * inv_c * gamma + beta


# ------------------ fused GroupNorm+SiLU+FiLM+Conv3x3 kernel ------------------

def _gn_conv3x3_kernel(*refs, H, W, Cin, Cout, n_x, inv_n, eps,
                       fuse_residual, n_res, has_skip_proj):
    it = iter(refs)
    x_refs = [next(it) for _ in range(n_x)]
    mask_ref, gamma_ref, beta_ref, film_ref, w_ref = (next(it) for _ in range(5))
    if fuse_residual:
        res_refs = [next(it) for _ in range(n_res)]
        scale_ref = next(it)
        skipw_ref = next(it) if has_skip_proj else None
    o_ref = next(it)
    pad_ref = next(it)
    col_ref = next(it)

    # Zero the padded-image border once; scratch persists across grid steps.
    @pl.when(pl.program_id(0) == 0)
    def _zero_pad():
        pad_ref[...] = jnp.zeros(pad_ref.shape, pad_ref.dtype)

    def load_cat(rs):
        parts = []
        for r in rs:
            c = r.shape[2] // W
            parts.append(r[0].reshape(H * W, c).astype(jnp.float32))
        return parts[0] if len(parts) == 1 else jnp.concatenate(parts, axis=-1)

    # Fused skip concatenation: channel halves arrive as separate refs.
    x = load_cat(x_refs)                                    # (H*W, Cin) f32

    # GroupNorm -> SiLU -> FiLM
    y = _group_norm(x, mask_ref[...], gamma_ref[...], beta_ref[...], inv_n, eps)
    y = y * jax.nn.sigmoid(y)
    film = film_ref[0]                                      # (1, 2*Cin)
    y = y * (1.0 + film[:, :Cin]) + film[:, Cin:]

    # 3x3 same-padding conv: write the activated image into the bf16 padded
    # scratch, build an im2col strip and run ONE MXU matmul with K = 9*Cin.
    pad_ref[1:H + 1, 1:W + 1, :] = y.reshape(H, W, Cin).astype(jnp.bfloat16)
    for t in range(9):
        di, dj = divmod(t, 3)
        col_ref[:, t * Cin:(t + 1) * Cin] = (
            pad_ref[di:di + H, dj:dj + W, :].reshape(H * W, Cin))
    h = jnp.dot(col_ref[...], w_ref[...],
                preferred_element_type=jnp.float32)          # (H*W, Cout)

    # Fused residual epilogue: optional 1x1 skip projection + res_scale.
    if fuse_residual:
        res = load_cat(res_refs)                             # (H*W, Cres) f32
        if has_skip_proj:
            skip = jnp.dot(res.astype(jnp.bfloat16), skipw_ref[...],
                           preferred_element_type=jnp.float32)
        else:
            skip = res
        h = skip + scale_ref[...] * h

    o_ref[0] = h.reshape(H, W * Cout).astype(o_ref.dtype)    # lane-dense store


def gn_silu_film_conv3x3(x_parts, x_chans, H, W, mask, gamma, beta, film, w_flat,
                         res_parts=None, res_chans=None, res_scale=None,
                         skip_w=None):
    B = x_parts[0].shape[0]
    Cin = sum(x_chans)
    Cout = w_flat.shape[-1]
    G = mask.shape[-1]
    inv_n = 1.0 / float(H * W * (Cin // G))
    n_x = len(x_parts)
    fuse_residual = res_parts is not None
    n_res = len(res_parts) if fuse_residual else 0
    has_skip = skip_w is not None

    kernel = functools.partial(
        _gn_conv3x3_kernel, H=H, W=W, Cin=Cin, Cout=Cout, n_x=n_x, inv_n=inv_n,
        eps=EPS, fuse_residual=fuse_residual, n_res=n_res, has_skip_proj=has_skip)

    in_specs, args = [], []
    for xp, c in zip(x_parts, x_chans):
        in_specs.append(pl.BlockSpec((1, H, W * c), lambda b: (b, 0, 0)))
        args.append(xp)
    in_specs += [pl.BlockSpec((Cin, G), lambda b: (0, 0)),
                 pl.BlockSpec((1, Cin), lambda b: (0, 0)),
                 pl.BlockSpec((1, Cin), lambda b: (0, 0)),
                 pl.BlockSpec((1, 1, 2 * Cin), lambda b: (b, 0, 0)),
                 pl.BlockSpec((9 * Cin, Cout), lambda b: (0, 0))]
    args += [mask, gamma, beta, film, w_flat]
    if fuse_residual:
        for rp, c in zip(res_parts, res_chans):
            in_specs.append(pl.BlockSpec((1, H, W * c), lambda b: (b, 0, 0)))
            args.append(rp)
        in_specs.append(pl.BlockSpec((1, Cout), lambda b: (0, 0)))
        args.append(res_scale)
        if has_skip:
            Cres = sum(res_chans)
            in_specs.append(pl.BlockSpec((Cres, Cout), lambda b: (0, 0)))
            args.append(skip_w)

    # TODO(synk): add a spatial row-tile (+1px halo) grid axis for v7x-sized images.
    return pl.pallas_call(
        kernel,
        grid=(B,),
        in_specs=in_specs,
        out_specs=pl.BlockSpec((1, H, W * Cout), lambda b: (b, 0, 0)),
        out_shape=jax.ShapeDtypeStruct((B, H, W * Cout), jnp.bfloat16),
        scratch_shapes=[pltpu.VMEM((H + 2, W + 2, Cin), jnp.bfloat16),
                        pltpu.VMEM((H * W, 9 * Cin), jnp.bfloat16)],
        compiler_params=pltpu.CompilerParams(
            dimension_semantics=("parallel",),
            vmem_limit_bytes=48 * 1024 * 1024),
    )(*args)


# ----------------------- fused SpatialAttention kernel -----------------------

def _attention_kernel(x_ref, mask_ref, gamma_ref, beta_ref, wqkv_ref, wout_ref,
                      o_ref, *, H, W, C, nh, hd, inner, inv_n, eps):
    N = H * W
    x = x_ref[0].reshape(N, C).astype(jnp.float32)
    xn = _group_norm(x, mask_ref[...], gamma_ref[...], beta_ref[...], inv_n, eps)
    xn = xn.astype(jnp.bfloat16)

    # qkv projection; the softmax scale is pre-folded into the q columns.
    qkv = jnp.dot(xn, wqkv_ref[...], preferred_element_type=jnp.float32)  # (N, 3*inner)

    out_acc = jnp.zeros((N, C), jnp.float32)
    for h in range(nh):
        q = qkv[:, h * hd:(h + 1) * hd].astype(jnp.bfloat16)
        k = qkv[:, inner + h * hd:inner + (h + 1) * hd].astype(jnp.bfloat16)
        v = qkv[:, 2 * inner + h * hd:2 * inner + (h + 1) * hd].astype(jnp.bfloat16)
        sim = lax.dot_general(q, k, (((1,), (1,)), ((), ())),
                              preferred_element_type=jnp.float32)          # (N, N)
        m = jnp.max(sim, axis=-1, keepdims=True)
        p = jnp.exp(sim - m)
        l = jnp.sum(p, axis=-1, keepdims=True)
        o_h = jnp.dot(p.astype(jnp.bfloat16), v,
                      preferred_element_type=jnp.float32) / l              # (N, hd)
        # Per-head accumulation of the output projection (no head concat).
        out_acc = out_acc + jnp.dot(o_h.astype(jnp.bfloat16),
                                    wout_ref[h * hd:(h + 1) * hd, :],
                                    preferred_element_type=jnp.float32)
    # TODO(synk): flash-style query tiling for large N (bounds the (N,N) sim in
    # VMEM on v7x); whole-image attention is fine at these sizes.
    o_ref[0] = (x + out_acc).reshape(H, W * C).astype(o_ref.dtype)


def spatial_attention(x, H, W, C, ap):
    B = x.shape[0]
    N = H * W
    inv_n = 1.0 / float(N * (C // ap['groups']))
    kernel = functools.partial(_attention_kernel, H=H, W=W, C=C, nh=ap['nh'],
                               hd=ap['hd'], inner=ap['inner'], inv_n=inv_n,
                               eps=EPS)
    return pl.pallas_call(
        kernel,
        grid=(B,),
        in_specs=[pl.BlockSpec((1, H, W * C), lambda b: (b, 0, 0)),
                  pl.BlockSpec((C, ap['groups']), lambda b: (0, 0)),
                  pl.BlockSpec((1, C), lambda b: (0, 0)),
                  pl.BlockSpec((1, C), lambda b: (0, 0)),
                  pl.BlockSpec((C, 3 * ap['inner']), lambda b: (0, 0)),
                  pl.BlockSpec((ap['inner'], C), lambda b: (0, 0))],
        out_specs=pl.BlockSpec((1, H, W * C), lambda b: (b, 0, 0)),
        out_shape=jax.ShapeDtypeStruct((B, H, W * C), jnp.bfloat16),
        compiler_params=pltpu.CompilerParams(
            dimension_semantics=("parallel",),
            vmem_limit_bytes=48 * 1024 * 1024),
    )(x, ap['mask'], ap['gamma'], ap['beta'], ap['wqkv'], ap['wout'])


# ------------------------------ model structure ------------------------------

def find_groups(ch, desired=32):
    g = desired
    while ch % g != 0 and g > 1:
        g -= 1
    if ch % g != 0:
        g = 1
    return g


def group_mask(C, G):
    """(C, G) exact 0/1 group-membership mask (replaces the dense C x C projector)."""
    cpg = C // G
    return (jnp.arange(C)[:, None] // cpg
            == jnp.arange(G)[None, :]).astype(jnp.float32)


def conv3x3_to_mat(w):
    """PyTorch (Cout, Cin, 3, 3) -> (9*Cin, Cout) bf16 im2col weight."""
    Cout, Cin, _, _ = w.shape
    return jnp.transpose(w, (2, 3, 1, 0)).reshape(9 * Cin, Cout).astype(jnp.bfloat16)


def init_decoder_params(key, filters, t_dim, depth, use_attn):
    def nk():
        nonlocal key
        key, sub = jax.random.split(key)
        return sub

    def randn(shape, s=0.1):
        return s * jax.random.normal(nk(), shape, dtype=jnp.float32)

    rev_filters = list(reversed(filters))
    rev_use_attn = list(reversed(use_attn))
    levels = []
    film_w_parts, film_b_parts = [], []
    film_off = 0
    current_ch = rev_filters[0]

    for i in range(len(rev_filters) - 1):
        ch_skip = rev_filters[i + 1]
        ch_up = ch_skip
        level = {}
        # ConvTranspose2d(current_ch, ch_up, kernel=2, stride=2), bias=True.
        wt = randn((current_ch, ch_up, 2, 2))                      # (Cin, Cout, kh, kw)
        up_w = jnp.transpose(wt, (0, 2, 3, 1)).reshape(current_ch, 4 * ch_up)
        up_b = randn((ch_up,))
        # FIX: tile the per-channel bias over the 2x2 kernel positions so it
        # matches the 4*ch_up matmul columns.
        level['up'] = prep_matmul(up_w, jnp.tile(up_b, 4), out_dtype=jnp.bfloat16)
        level['up_cout'] = ch_up
        current_ch = ch_up
        res_in = current_ch + ch_skip

        blocks = []
        for j in range(depth):
            cin = res_in if j == 0 else ch_up
            cout = ch_up
            g1, g2 = find_groups(cin), find_groups(cout)
            blk = dict(
                cin=cin, cout=cout,
                n1_gamma=jnp.ones((1, cin), jnp.float32),
                n1_beta=jnp.zeros((1, cin), jnp.float32),
                n2_gamma=jnp.ones((1, cout), jnp.float32),
                n2_beta=jnp.zeros((1, cout), jnp.float32),
                mask1=group_mask(cin, g1), mask2=group_mask(cout, g2),
                c1=conv3x3_to_mat(randn((cout, cin, 3, 3))),
                c2=conv3x3_to_mat(randn((cout, cout, 3, 3))),
                skip=(None if cin == cout
                      else randn((cout, cin, 1, 1))[:, :, 0, 0].T.astype(jnp.bfloat16)),
                res_scale=jnp.ones((1, cout), jnp.float32),
                f1_off=film_off)
            film_w_parts.append(randn((t_dim, 2 * cin)))
            film_b_parts.append(randn((2 * cin,)))
            film_off += 2 * cin
            blk['f2_off'] = film_off
            film_w_parts.append(randn((t_dim, 2 * cout)))
            film_b_parts.append(randn((2 * cout,)))
            film_off += 2 * cout
            blocks.append(blk)
            current_ch = cout
        level['res'] = blocks

        if rev_use_attn[i + 1]:
            ch = current_ch
            nh = 8
            hd = ch // nh if ch // nh > 0 else 1
            inner = hd * nh
            if inner > ch:
                hd = ch // nh
                if hd == 0:
                    nh, hd = ch, 1
                inner = hd * nh
            g = find_groups(ch)
            scale = float(hd) ** (-0.5)
            wqkv = randn((inner * 3, ch, 1, 1))[:, :, 0, 0].T       # (ch, 3*inner)
            wqkv = wqkv.at[:, :inner].multiply(scale)               # fold scale into q
            level['attn'] = dict(
                nh=nh, hd=hd, inner=inner, groups=g,
                gamma=jnp.ones((1, ch), jnp.float32),
                beta=jnp.zeros((1, ch), jnp.float32),
                mask=group_mask(ch, g),
                wqkv=wqkv.astype(jnp.bfloat16),
                wout=jnp.zeros((inner, ch), jnp.bfloat16))          # zero init (module)
        else:
            level['attn'] = None
        levels.append(level)

    film_w = jnp.concatenate(film_w_parts, axis=1)
    film_b = jnp.concatenate(film_b_parts, axis=0)
    return dict(levels=levels,
                film=prep_matmul(film_w, film_b, out_dtype=jnp.float32))


def decoder_forward(params, x_nchw, skips_nchw, t_emb):
    B = x_nchw.shape[0]

    def to_act(a):  # NCHW -> lane-dense (B, H, W*C) bf16 activation layout
        a = jnp.transpose(a, (0, 2, 3, 1))
        _, H, W, C = a.shape
        return a.reshape(B, H, W * C).astype(jnp.bfloat16), H, W, C

    x, H, W, C = to_act(x_nchw)
    skips = [to_act(s) for s in reversed(list(skips_nchw))]

    # Every ResBlock's FiLM projection in ONE tiled matmul (kept f32: tiny).
    film_all = pallas_matmul(t_emb, params['film'])                  # (B, total)

    for i, level in enumerate(params['levels']):
        cu = level['up_cout']
        # ConvTranspose2d(k=2, s=2): per-pixel matmul + bf16 pixel shuffle.
        y = pallas_matmul(x.reshape(B * H * W, C), level['up'])      # (B*H*W, 4*cu) bf16
        y = y.reshape(B, H, W, 2, 2, cu).transpose(0, 1, 3, 2, 4, 5)
        H, W = 2 * H, 2 * W
        y = y.reshape(B, H, W * cu)
        # TODO(synk): absorb the pixel shuffle into the consumer kernel's read layout.

        skip, Hs, Ws, cs = skips[i]
        # TODO(synk): F.interpolate(bilinear) fallback for mismatched spatial
        # sizes is not implemented; k=2/s=2 U-Net shapes always match.
        assert (Hs, Ws) == (H, W)

        # Concat is fused into the ResBlock kernels (two channel-half refs).
        x_parts, x_chans = [y, skip], [cu, cs]

        for blk in level['res']:
            cin, cout = blk['cin'], blk['cout']
            f1 = film_all[:, blk['f1_off']:blk['f1_off'] + 2 * cin].reshape(B, 1, 2 * cin)
            f2 = film_all[:, blk['f2_off']:blk['f2_off'] + 2 * cout].reshape(B, 1, 2 * cout)
            # First half: n1 -> SiLU -> FiLM1 -> c1   (one fused kernel).
            h = gn_silu_film_conv3x3(x_parts, x_chans, H, W, blk['mask1'],
                                     blk['n1_gamma'], blk['n1_beta'], f1, blk['c1'])
            # Second half: n2 -> SiLU -> FiLM2 -> c2 -> (+1x1 skip, res_scale) fused.
            # TODO(synk): Dropout2d omitted (drop=0.0 -> Identity / eval).
            out = gn_silu_film_conv3x3([h], [cout], H, W, blk['mask2'],
                                       blk['n2_gamma'], blk['n2_beta'], f2, blk['c2'],
                                       res_parts=x_parts, res_chans=x_chans,
                                       res_scale=blk['res_scale'], skip_w=blk['skip'])
            x_parts, x_chans = [out], [cout]

        x, C = x_parts[0], x_chans[0]
        if level['attn'] is not None:
            x = spatial_attention(x, H, W, C, level['attn'])

    # (B, H, W*C) bf16 -> NCHW f32
    return jnp.transpose(x.reshape(B, H, W, C), (0, 3, 1, 2)).astype(jnp.float32)


# ----------------------------------- main ------------------------------------

if __name__ == "__main__":
    B, t_dim = 2, 32
    filters = [16, 32]        # encoder order; decoder consumes reversed
    depth = 2
    use_attn = [True, False]
    S_bottom = 8              # bottleneck spatial size (decoder input)

    key = jax.random.PRNGKey(0)
    kp, kx, ks, kt = jax.random.split(key, 4)
    params = init_decoder_params(kp, filters, t_dim, depth, use_attn)

    x = jax.random.normal(kx, (B, filters[-1], S_bottom, S_bottom), dtype=jnp.float32)
    skips = [jax.random.normal(ks, (B, filters[0], 2 * S_bottom, 2 * S_bottom),
                               dtype=jnp.float32)]
    t_emb = jax.random.normal(kt, (B, t_dim), dtype=jnp.float32)

    out = decoder_forward(params, x, skips, t_emb)
    out = jax.block_until_ready(out)

    assert out.shape == (B, filters[0], 2 * S_bottom, 2 * S_bottom), out.shape
    assert bool(jnp.all(jnp.isfinite(out)))
    print("KERNEL_OK")
</pallas_src>

<mosaic_0001>
module attributes {stable_mosaic.version = 11 : i64} {
  func.func @_matmul_kernel(%arg0: i32, %arg1: i32, %arg2: i32, %arg3: memref<8x32xbf16, #tpu.memory_space<vmem>>, %arg4: memref<32x256xbf16, #tpu.memory_space<vmem>>, %arg5: memref<1x256xf32, #tpu.memory_space<vmem>>, %arg6: memref<8x256xf32, #tpu.memory_space<vmem>>, %arg7: memref<8x256xf32, #tpu.memory_space<vmem>>) attributes {dimension_semantics = [#tpu.dimension_semantics<parallel>, #tpu.dimension_semantics<parallel>, #tpu.dimension_semantics<arbitrary>], iteration_bounds = array<i64: 1, 1, 1>, scalar_prefetch = 0 : i64, scratch_operands = 1 : i64, tpu.core_type = #tpu.core_type<tc>, window_params = [{transform_indices = @transform_0, window_bounds = array<i64: 8, 32>}, {transform_indices = @transform_1, window_bounds = array<i64: 32, 256>}, {transform_indices = @transform_2, window_bounds = array<i64: 1, 256>}, {transform_indices = @transform_3, window_bounds = array<i64: 8, 256>}]} {
    %c0_i32 = arith.constant 0 : i32
    %0 = arith.cmpi eq, %arg2, %c0_i32 : i32
    %1 = arith.extui %0 : i1 to i32
    %c0_i32_0 = arith.constant 0 : i32
    %2 = arith.cmpi ne, %1, %c0_i32_0 : i32
    scf.if %2 {
      %cst_10 = arith.constant 0.000000e+00 : f32
      %12 = vector.broadcast %cst_10 : f32 to vector<8x256xf32>
      %c0_11 = arith.constant 0 : index
      %c0_12 = arith.constant 0 : index
      %13 = vector.load %arg7[%c0_11, %c0_12] : memref<8x256xf32, #tpu.memory_space<vmem>>, vector<8x256xf32>
      tpu.vector_store %arg7[%c0_11, %c0_12], %12 {strides = array<i32>} : memref<8x256xf32, #tpu.memory_space<vmem>>, vector<8x256xf32>,
    } else {
    }
    %c0 = arith.constant 0 : index
    %c0_1 = arith.constant 0 : index
    %3 = vector.load %arg7[%c0, %c0_1] : memref<8x256xf32, #tpu.memory_space<vmem>>, vector<8x256xf32>
    %c0_2 = arith.constant 0 : index
    %c0_3 = arith.constant 0 : index
    %4 = vector.load %arg3[%c0_2, %c0_3] : memref<8x32xbf16, #tpu.memory_space<vmem>>, vector<8x32xbf16>
    %c0_4 = arith.constant 0 : index
    %c0_5 = arith.constant 0 : index
    %5 = vector.load %arg4[%c0_4, %c0_5] : memref<32x256xbf16, #tpu.memory_space<vmem>>, vector<32x256xbf16>
    %cst = arith.constant dense<0.000000e+00> : vector<8x256xf32>
    %6 = tpu.matmul %4, %5, %cst {dimension_numbers = #tpu.dot_dimension_numbers<[1], [0], [0], [1], [0, 0, 1, 1], [], []>} : vector<8x32xbf16>, vector<32x256xbf16>, vector<8x256xf32> -> vector<8x256xf32>
    %7 = arith.addf %3, %6 : vector<8x256xf32>
    %c0_6 = arith.constant 0 : index
    %c0_7 = arith.constant 0 : index
    %8 = vector.load %arg7[%c0_6, %c0_7] : memref<8x256xf32, #tpu.memory_space<vmem>>, vector<8x256xf32>
    tpu.vector_store %arg7[%c0_6, %c0_7], %7 {strides = array<i32>} : memref<8x256xf32, #tpu.memory_space<vmem>>, vector<8x256xf32>,
    %c0_i32_8 = arith.constant 0 : i32
    %9 = arith.cmpi eq, %arg2, %c0_i32_8 : i32
    %10 = arith.extui %9 : i1 to i32
    %c0_i32_9 = arith.constant 0 : i32
    %11 = arith.cmpi ne, %10, %c0_i32_9 : i32
    scf.if %11 {
      %c0_10 = arith.constant 0 : index
      %c0_11 = arith.constant 0 : index
      %12 = vector.load %arg7[%c0_10, %c0_11] : memref<8x256xf32, #tpu.memory_space<vmem>>, vector<8x256xf32>
      %c0_12 = arith.constant 0 : index
      %c0_13 = arith.constant 0 : index
      %13 = vector.load %arg5[%c0_12, %c0_13] : memref<1x256xf32, #tpu.memory_space<vmem>>, vector<1x256xf32>
      %14 = vector.broadcast %13 : vector<1x256xf32> to vector<8x256xf32>
      %15 = arith.addf %12, %14 : vector<8x256xf32>
      %c0_14 = arith.constant 0 : index
      %c0_15 = arith.constant 0 : index
      %16 = vector.load %arg6[%c0_14, %c0_15] : memref<8x256xf32, #tpu.memory_space<vmem>>, vector<8x256xf32>
      tpu.vector_store %arg6[%c0_14, %c0_15], %15 {strides = array<i32>} : memref<8x256xf32, #tpu.memory_space<vmem>>, vector<8x256xf32>,
    } else {
    }
    return
  }
  func.func @transform_0(%arg0: i32, %arg1: i32, %arg2: i32) -> (i32, i32) {
    %c0_i32 = arith.constant 0 : i32
    return %arg0, %arg2 : i32, i32
  }
  func.func @transform_1(%arg0: i32, %arg1: i32, %arg2: i32) -> (i32, i32) {
    %c0_i32 = arith.constant 0 : i32
    return %arg2, %arg1 : i32, i32
  }
  func.func @transform_2(%arg0: i32, %arg1: i32, %arg2: i32) -> (i32, i32) {
    %c0_i32 = arith.constant 0 : i32
    %c0_i32_0 = arith.constant 0 : i32
    return %c0_i32, %arg1 : i32, i32
  }
  func.func @transform_3(%arg0: i32, %arg1: i32, %arg2: i32) -> (i32, i32) {
    %c0_i32 = arith.constant 0 : i32
    return %arg0, %arg1 : i32, i32
  }
}

</mosaic_0001>

<llo_original>
// kernel: tpu_custom_call.1
$region0: #{tpu_custom_call.1}
  #allocation0 [shape = 'u32[]', space=smem, size = 0x4, offset = 0x4, fixed_abs, tag = 'smem constant byte address 0x4 - core index']
  #allocation1 [shape = 'u32[144,128]{1,0:T(1,128)}', space=vmem, size = 0x12000, scoped, tag = 'internal scratch']
  #allocation2 [shape = 'f32[8,256]{1,0:T(8,128)}', space=vmem, size = 0x2000, scoped, tag = 'scratch operand']
  %s0 = inlined_call_operand.hbm [shape: bf16[8,32], index: 0, kind: input, shape index: {}]
  %s1 = inlined_call_operand.hbm [shape: bf16[32,256], index: 1, kind: input, shape index: {}]
  %s2 = inlined_call_operand.vmem [shape: f32[1,256], index: 2, kind: input, shape index: {}]
  %s3 = inlined_call_operand.hbm [shape: f32[8,256], index: 3, kind: output, shape index: {}]
  %s4 = sld [smem:[#allocation0]]
  $region38: #{tpu_custom_call.1} parent=0
    _
  %s6 = ssub.s32 1, %s4
  %s7 = scalar_select 0, %s6, %s4
  $region1: #{tpu_custom_call.1} parent=0
    #allocation3 [shape = 'u8[2048]{0}', space=vmem, size = 0x800, scoped, tag = 'input window, operand 0, single buffered']
    #allocation4 [shape = 's32[1]{0}', space=sflag, size = 0x4, scoped, tag = 'scoped memory for tpu_custom_call.1']
    #allocation5 [shape = 's32[1]{0}', space=sflag, size = 0x4, scoped, tag = 'scoped memory for tpu_custom_call.1']
    #allocation6 [shape = 'u8[16384]{0}', space=vmem, size = 0x4000, scoped, tag = 'input window, operand 1, single buffered']
    #allocation7 [shape = 's32[1]{0}', space=sflag, size = 0x4, scoped, tag = 'scoped memory for tpu_custom_call.1']
    #allocation8 [shape = 'u8[8192]{0}', space=vmem, size = 0x2000, scoped, tag = 'output window, operand 0, single buffered']
    %8 = vsyncpa [#allocation4], 0
    %9 = vsyncpa [#allocation7], 0
    %10 = vsyncpa [#allocation5], 0
    // Predicated region
    $region2: #{tpu_custom_call.1} parent=1 // pred_check
      _
    $region3: #{tpu_custom_call.1} parent=1 // pred_check_branch
      %12 = sbr.rel (0) target = $region5
    $region4: #{tpu_custom_call.1} parent=1 // pred_region
      %s14 = ssub.s32 64, 64
      %15 = vsyncadd [#allocation4], %s14
      %s17 = sshll.u32 [#allocation3], 4
      %s18 = int_to_ptr.vmem [resolvable:$true] %s17
      %20 = dma.hbm_to_vmem [thread:$0]  %s0, 64, %s18, [#allocation4]
    $region5: #{tpu_custom_call.1} parent=1 // pred_fallthru
      _
    // Predicated region
    $region6: #{tpu_custom_call.1} parent=1 // pred_check
      _
    $region7: #{tpu_custom_call.1} parent=1 // pred_check_branch
      %22 = sbr.rel (0) target = $region9
    $region8: #{tpu_custom_call.1} parent=1 // pred_region
      %s24 = ssub.s32 512, 512
      %25 = vsyncadd [#allocation7], %s24
      %s26 = sshll.u32 [#allocation6], 4
      %s27 = int_to_ptr.vmem [resolvable:$true] %s26
      %32 = dma.hbm_to_vmem [thread:$0]  %s1, 512, %s27, [#allocation7], 128, 128, 8
    $region9: #{tpu_custom_call.1} parent=1 // pred_fallthru
      _
    // Predicated region
    $region10: #{tpu_custom_call.1} parent=1 // pred_check
      _
    $region11: #{tpu_custom_call.1} parent=1 // pred_check_branch
      %34 = sbr.rel (0) target = $region13
    $region12: #{tpu_custom_call.1} parent=1 // pred_region
      _
    $region13: #{tpu_custom_call.1} parent=1 // pred_fallthru
      _
    // Predicated region
    $region14: #{tpu_custom_call.1} parent=1 // pred_check
      _
    $region15: #{tpu_custom_call.1} parent=1 // pred_check_branch
      %36 = sbr.rel (0) target = $region17
    $region16: #{tpu_custom_call.1} parent=1 // pred_region
      %37 = dma.done [#allocation4], 64
    $region17: #{tpu_custom_call.1} parent=1 // pred_fallthru
      _
    // Predicated region
    $region18: #{tpu_custom_call.1} parent=1 // pred_check
      _
    $region19: #{tpu_custom_call.1} parent=1 // pred_check_branch
      %39 = sbr.rel (0) target = $region21
    $region20: #{tpu_custom_call.1} parent=1 // pred_region
      %40 = dma.done [#allocation7], 512
    $region21: #{tpu_custom_call.1} parent=1 // pred_fallthru
      _
    %p42 = scmp.eq.s32.totalorder 0, 0
    // Predicated region
    $region22: #{tpu_custom_call.1} parent=1 // pred_check
      %p43 = pneg %p42
    $region23: #{tpu_custom_call.1} parent=1 // pred_check_branch
      %45 = sbr.rel (%p43) target = $region25
    $region24: #{tpu_custom_call.1} parent=1 // pred_region
      %46 = vst [vmem:[#allocation2] sm:$0xff] 0.0
      %47 = vst [vmem:[#allocation2 + $0x8] sm:$0xff] 0.0
    $region25: #{tpu_custom_call.1} parent=1 // pred_fallthru
      _
    %v48 = vld [vmem:[#allocation2] sm:$0xff]
    %v49 = vld [vmem:[#allocation2 + $0x8] sm:$0xff]
    %v50 = vld [vmem:[#allocation3] sm:$0xf]
    %v51 = vld [vmem:[#allocation6] sm:$0xff]
    %v52 = vld [vmem:[#allocation6 + $0x8] sm:$0xff]
    %v53 = vld [vmem:[#allocation6 + $0x10] sm:$0xff]
    %v54 = vld [vmem:[#allocation6 + $0x18] sm:$0xff]
    %v59 = vunpack.c.l.b16 %v51
    %v60 = vunpack.c.h.b16 %v51
    %v61 = vunpack.c.l.b16 %v52
    %v62 = vunpack.c.h.b16 %v52
    %v63 = vunpack.c.l.b16 %v53
    %v64 = vunpack.c.h.b16 %v53
    %v65 = vunpack.c.l.b16 %v54
    %v66 = vunpack.c.h.b16 %v54
    %v67 = vpack.c.b16 %v61, %v59
    %v68 = vpack.c.b16 %v62, %v60
    %v69 = vpack.c.b16 %v65, %v63
    %v70 = vpack.c.b16 %v66, %v64
    %vm75 = vcmask 261120
    %v77 = vsel %vm75, %v50, 0
    %79 = vmatprep.subr.bf16.mxu0 %v68
    %80 = vmatpush1.bf16.msra.mxu0 %v67
    %81 = vmatprep.subr.bf16.mxu0 %v70
    %82 = vmatpush1.bf16.msra.mxu0 %v69
    %83 = vmatprep.subr.bf16.mxu0 0
    %84 = vmatpush1.bf16.msra.mxu0 0
    %85 = vmatprep.subr.bf16.mxu0 0
    %86 = vmatpush1.bf16.msra.mxu0 0
    %87 = vmatprep.subr.bf16.mxu0 0
    %88 = vmatpush1.bf16.msra.mxu0 0
    %89 = vmatprep.subr.bf16.mxu0 0
    %90 = vmatpush1.bf16.msra.mxu0 0
    %91 = vmatprep.subr.bf16.mxu0 0
    %92 = vmatpush1.bf16.msra.mxu0 0
    %93 = vmatprep.subr.bf16.mxu0 0
    %94 = vmatpush1.bf16.msra.mxu0 0
    %95 = vmatprep.subr.bf16.mxu0 0
    %96 = vmatpush1.bf16.msra.mxu0 0
    %97 = vmatprep.subr.bf16.mxu0 0
    %98 = vmatpush1.bf16.msra.mxu0 0
    %99 = vmatprep.subr.bf16.mxu0 0
    %100 = vmatpush1.bf16.msra.mxu0 0
    %101 = vmatprep.subr.bf16.mxu0 0
    %102 = vmatpush1.bf16.msra.mxu0 0
    %103 = vmatprep.subr.bf16.mxu0 0
    %104 = vmatpush1.bf16.msra.mxu0 0
    %105 = vmatprep.subr.bf16.mxu0 0
    %106 = vmatpush1.bf16.msra.mxu0 0
    %107 = vmatprep.subr.bf16.mxu0 0
    %108 = vmatpush1.bf16.msra.mxu0 0
    %109 = vmatprep.subr.bf16.mxu0 0
    %110 = vmatpush1.bf16.msra.mxu0 0
    %111 = vmatprep.mubr.bf16.mxu0 0
    %112 = vmatmul.mubr.bf16.gmra.mrb[0].mxu0 %v77
    %v113 = vpop.f32.mrb[0].mxu0
    %v114 = vadd.f32 0.0, %v113
    %v115 = vpop.f32.mrb[0].mxu0
    %v116 = vadd.f32 0.0, %v115
    %v117 = vpop.f32.mrb[0].mxu0
    %v118 = vpop.f32.mrb[0].mxu0
    %119 = vdwg.mxu0
    %v120 = vadd.f32 %v48, %v114
    %v121 = vadd.f32 %v49, %v116
    %122 = vst [vmem:[#allocation2] sm:$0xff] %v120
    %123 = vst [vmem:[#allocation2 + $0x8] sm:$0xff] %v121
    // Predicated region
    $region26: #{tpu_custom_call.1} parent=1 // pred_check
      %p124 = pneg %p42
    $region27: #{tpu_custom_call.1} parent=1 // pred_check_branch
      %126 = sbr.rel (%p124) target = $region29
    $region28: #{tpu_custom_call.1} parent=1 // pred_region
      %v127 = vld [vmem:[#allocation2] sm:$0xff]
      %v128 = vld [vmem:[#allocation2 + $0x8] sm:$0xff]
      %v129 = vld [vmem:[%s2] sm:$0x3]
      %v131 = vlaneseq
      %v132 = vshrl.u32 %v131, 7
      %v133 = vsub.s32 0, %v132
      %v134 = vrot.slane %v129, %v133
      %v135 = vlaneseq
      %v136 = vshrl.u32 %v135, 7
      %v137 = vsub.s32 1, %v136
      %v138 = vrot.slane %v129, %v137
      %v141 = vadd.f32 %v127, %v134
      %v142 = vadd.f32 %v128, %v138
      %143 = vst [vmem:[#allocation8] sm:$0xff] %v141
      %144 = vst [vmem:[#allocation8 + $0x8] sm:$0xff] %v142
    $region29: #{tpu_custom_call.1} parent=1 // pred_fallthru
      _
    // Predicated region
    $region30: #{tpu_custom_call.1} parent=1 // pred_check
      _
    $region31: #{tpu_custom_call.1} parent=1 // pred_check_branch
      %146 = sbr.rel (0) target = $region33
    $region32: #{tpu_custom_call.1} parent=1 // pred_region
      %s148 = ssub.s32 256, 256
      %149 = vsyncadd [#allocation5], %s148
      %s151 = sshll.u32 [#allocation8], 4
      %s152 = int_to_ptr.vmem [resolvable:$true] %s151
      %154 = dma.vmem_to_hbm [thread:$0]  %s152, 256, %s3, [#allocation5]
    $region33: #{tpu_custom_call.1} parent=1 // pred_fallthru
      _
    // Predicated region
    $region34: #{tpu_custom_call.1} parent=1 // pred_check
      _
    $region35: #{tpu_custom_call.1} parent=1 // pred_check_branch
      %156 = sbr.rel (0) target = $region37
    $region36: #{tpu_custom_call.1} parent=1 // pred_region
      %157 = dma.done [#allocation5], 256
    $region37: #{tpu_custom_call.1} parent=1 // pred_fallthru
      _
    %158 = vsyncpa [#allocation4], 1
    %159 = vsyncpa [#allocation7], 1
    %160 = vsyncpa [#allocation5], 1

</llo_original>
